<compile_context>
chip_gen: v5e
topology: v5e:2x2
jax: 0.10.0
libtpu: 0.0.40
codegen_flags: <defaults>
</compile_context>

<pallas_src>
import functools

import jax
import jax.numpy as jnp
from jax.experimental import pallas as pl
from jax.experimental.pallas import tpu as pltpu


def _round_up(n: int, m: int) -> int:
    return ((n + m - 1) // m) * m


def _l2softmax_kernel(x_ref, w_ref, b_ref, o_ref, *, alpha: float):
    # x_ref: (TM, Kp)  f32
    # w_ref: (Np, Kp)  f32   (PyTorch Linear layout [out, in]; contract on dim 1)
    # b_ref: (1,  Np)  f32
    # o_ref: (TM, Np)  f32
    z = jax.lax.dot_general(
        x_ref[...], w_ref[...],
        dimension_numbers=(((1,), (1,)), ((), ())),   # x @ W^T without a transpose
        preferred_element_type=jnp.float32,
    )
    z = z + b_ref[...]                                # broadcast (1, Np) over rows

    # Row-wise L2 norm.  Padded columns are exactly zero -> do not affect the sum.
    sq = jnp.sum(z * z, axis=1, keepdims=True)        # (TM, 1)
    norm = jnp.sqrt(sq)                               # (TM, 1)
    # Exact torch.nn.functional.normalize semantics: z / max(||z||, 1e-12), then *alpha.
    # The divide touches only a (TM, 1) column; the (TM, Np) tile sees one multiply.
    inv = alpha / jnp.maximum(norm, 1e-12)            # (TM, 1)
    o_ref[...] = (z * inv).astype(o_ref.dtype)


def l2softmax(x, weight, bias, alpha: float = 16.0, block_m: int = 128):
    """x: [B, in_features]; weight: [out_dim, in_features]; bias: [out_dim]."""
    B, K = x.shape
    N = weight.shape[0]

    Kp = _round_up(K, 128)                 # aligned contraction dim (full MXU passes)
    Np = _round_up(N, 128)                 # lane-dense output (unmasked stores)
    TM = min(block_m, _round_up(B, 8))     # batch tile (multiple of 8 sublanes)
    Bp = _round_up(B, TM)

    xf = x.astype(jnp.float32)
    wf = weight.astype(jnp.float32)
    bf = bias.astype(jnp.float32)

    # Zero padding (in real use, pad weight/bias once at init instead of per call).
    x_p = jnp.pad(xf, ((0, Bp - B), (0, Kp - K)))
    w_p = jnp.pad(wf, ((0, Np - N), (0, Kp - K)))
    b_p = jnp.pad(bf, (0, Np - N)).reshape(1, Np)

    kernel = functools.partial(_l2softmax_kernel, alpha=float(alpha))

    out_p = pl.pallas_call(
        kernel,
        out_shape=jax.ShapeDtypeStruct((Bp, Np), jnp.float32),
        grid_spec=pltpu.PrefetchScalarGridSpec(
            num_scalar_prefetch=0,
            grid=(Bp // TM,),                                   # tile over batch only
            in_specs=[
                pl.BlockSpec((TM, Kp), lambda i: (i, 0)),       # x tile follows batch
                pl.BlockSpec((Np, Kp), lambda i: (0, 0)),       # weight pinned
                pl.BlockSpec((1, Np), lambda i: (0, 0)),        # bias pinned
            ],
            out_specs=pl.BlockSpec((TM, Np), lambda i: (i, 0)),
        ),
        compiler_params=pltpu.CompilerParams(
            # Rows are independent -> parallel (shards across both TCs on v7x).
            dimension_semantics=("parallel",),
        ),
    )(x_p, w_p, b_p)

    # Slice away batch / out_dim padding.
    return out_p[:B, :N]
    # TODO(synk): if in_features ever grows large, add a trailing "arbitrary" K grid
    # axis with an f32 VMEM accumulator and do the bias+normalize epilogue under
    # pl.when(k == last); not needed at K ~ 100.


if __name__ == "__main__":
    # Module defaults: last_p_dim=100 (input features), alpha=16; out_dim=32, batch=8.
    B, last_p_dim, out_dim, alpha = 8, 100, 32, 16.0

    key = jax.random.PRNGKey(0)
    kx, kw, kb = jax.random.split(key, 3)

    x = jax.random.normal(kx, (B, last_p_dim), dtype=jnp.float32)
    # PyTorch-style Linear init: uniform(-1/sqrt(in), 1/sqrt(in))
    bound = 1.0 / (last_p_dim ** 0.5)
    weight = jax.random.uniform(kw, (out_dim, last_p_dim),
                                minval=-bound, maxval=bound, dtype=jnp.float32)
    bias = jax.random.uniform(kb, (out_dim,),
                              minval=-bound, maxval=bound, dtype=jnp.float32)

    out = l2softmax(x, weight, bias, alpha=alpha)
    out = jax.block_until_ready(out)

    # Reference in plain JAX (matches torch: Linear -> normalize(dim=1) -> *alpha)
    z_ref = x @ weight.T + bias
    denom = jnp.maximum(jnp.sqrt(jnp.sum(z_ref * z_ref, axis=1, keepdims=True)), 1e-12)
    ref = (z_ref / denom) * alpha

    assert out.shape == (B, out_dim)
    assert jnp.allclose(out, ref, atol=1e-5, rtol=1e-5)

    print("KERNEL_OK")
</pallas_src>

<mosaic_0001>
module attributes {stable_mosaic.version = 11 : i64} {
  func.func @_l2softmax_kernel(%arg0: i32, %arg1: memref<8x128xf32, #tpu.memory_space<vmem>>, %arg2: memref<128x128xf32, #tpu.memory_space<vmem>>, %arg3: memref<1x128xf32, #tpu.memory_space<vmem>>, %arg4: memref<8x128xf32, #tpu.memory_space<vmem>>) attributes {dimension_semantics = [#tpu.dimension_semantics<parallel>], iteration_bounds = array<i64: 1>, scalar_prefetch = 0 : i64, scratch_operands = 0 : i64, tpu.core_type = #tpu.core_type<tc>, window_params = [{transform_indices = @transform_0, window_bounds = array<i64: 8, 128>}, {pipeline_mode = #tpu.pipeline_mode<synchronous>, transform_indices = @transform_1, window_bounds = array<i64: 128, 128>}, {pipeline_mode = #tpu.pipeline_mode<synchronous>, transform_indices = @transform_2, window_bounds = array<i64: 1, 128>}, {transform_indices = @transform_3, window_bounds = array<i64: 8, 128>}]} {
    %c0 = arith.constant 0 : index
    %c0_0 = arith.constant 0 : index
    %0 = vector.load %arg1[%c0, %c0_0] : memref<8x128xf32, #tpu.memory_space<vmem>>, vector<8x128xf32>
    %c0_1 = arith.constant 0 : index
    %c0_2 = arith.constant 0 : index
    %1 = vector.load %arg2[%c0_1, %c0_2] : memref<128x128xf32, #tpu.memory_space<vmem>>, vector<128x128xf32>
    %cst = arith.constant dense<0.000000e+00> : vector<8x128xf32>
    %2 = tpu.matmul %0, %1, %cst {dimension_numbers = #tpu.dot_dimension_numbers<[1], [1], [0], [0], [0, 0, 1, 0], [], []>} : vector<8x128xf32>, vector<128x128xf32>, vector<8x128xf32> -> vector<8x128xf32>
    %c0_3 = arith.constant 0 : index
    %c0_4 = arith.constant 0 : index
    %3 = vector.load %arg3[%c0_3, %c0_4] : memref<1x128xf32, #tpu.memory_space<vmem>>, vector<1x128xf32>
    %4 = vector.broadcast %3 : vector<1x128xf32> to vector<8x128xf32>
    %5 = arith.addf %2, %4 : vector<8x128xf32>
    %6 = arith.mulf %5, %5 : vector<8x128xf32>
    %cst_5 = arith.constant dense<0.000000e+00> : vector<8xf32>
    %7 = vector.multi_reduction <add>, %6, %cst_5 [1] : vector<8x128xf32> to vector<8xf32>
    %8 = vector.shape_cast %7 : vector<8xf32> to vector<8x1xf32>
    %9 = math.sqrt %8 : vector<8x1xf32>
    %cst_6 = arith.constant 9.99999996E-13 : f32
    %10 = vector.broadcast %cst_6 : f32 to vector<8x1xf32>
    %11 = arith.maximumf %9, %10 : vector<8x1xf32>
    %cst_7 = arith.constant 1.600000e+01 : f32
    %12 = vector.broadcast %cst_7 : f32 to vector<8x1xf32>
    %13 = arith.divf %12, %11 : vector<8x1xf32>
    %14 = vector.broadcast %13 : vector<8x1xf32> to vector<8x128xf32>
    %15 = arith.mulf %5, %14 : vector<8x128xf32>
    %c0_8 = arith.constant 0 : index
    %c0_9 = arith.constant 0 : index
    %16 = vector.load %arg4[%c0_8, %c0_9] : memref<8x128xf32, #tpu.memory_space<vmem>>, vector<8x128xf32>
    tpu.vector_store %arg4[%c0_8, %c0_9], %15 {strides = array<i32>} : memref<8x128xf32, #tpu.memory_space<vmem>>, vector<8x128xf32>,
    return
  }
  func.func @transform_0(%arg0: i32) -> (i32, i32) {
    %c0_i32 = arith.constant 0 : i32
    %c0_i32_0 = arith.constant 0 : i32
    return %arg0, %c0_i32 : i32, i32
  }
  func.func @transform_1(%arg0: i32) -> (i32, i32) {
    %c0_i32 = arith.constant 0 : i32
    %c0_i32_0 = arith.constant 0 : i32
    %c0_i32_1 = arith.constant 0 : i32
    return %c0_i32, %c0_i32_0 : i32, i32
  }
  func.func @transform_2(%arg0: i32) -> (i32, i32) {
    %c0_i32 = arith.constant 0 : i32
    %c0_i32_0 = arith.constant 0 : i32
    %c0_i32_1 = arith.constant 0 : i32
    return %c0_i32, %c0_i32_0 : i32, i32
  }
  func.func @transform_3(%arg0: i32) -> (i32, i32) {
    %c0_i32 = arith.constant 0 : i32
    %c0_i32_0 = arith.constant 0 : i32
    return %arg0, %c0_i32 : i32, i32
  }
}

</mosaic_0001>

<llo_original>
// kernel: tpu_custom_call.1
$region0: #{tpu_custom_call.1}
  #allocation0 [shape = 'u32[]', space=smem, size = 0x4, offset = 0x4, fixed_abs, tag = 'smem constant byte address 0x4 - core index']
  #allocation1 [shape = 'u32[72,128]{1,0:T(1,128)}', space=vmem, size = 0x9000, scoped, tag = 'internal scratch']
  %s0 = inlined_call_operand.hbm [shape: f32[8,128], index: 0, kind: input, shape index: {}]
  %s1 = inlined_call_operand.hbm [shape: f32[128,128], index: 1, kind: input, shape index: {}]
  %s2 = inlined_call_operand.vmem [shape: f32[1,128], index: 2, kind: input, shape index: {}]
  %s3 = inlined_call_operand.hbm [shape: f32[8,128], index: 3, kind: output, shape index: {}]
  %s4 = sld [smem:[#allocation0]]
  $region30: #{tpu_custom_call.1} parent=0
    _
  %s6 = ssub.s32 1, %s4
  %s7 = scalar_select 0, %s6, %s4
  $region1: #{tpu_custom_call.1} parent=0
    #allocation2 [shape = 'u8[4096]{0}', space=vmem, size = 0x1000, scoped, tag = 'input window, operand 0, single buffered']
    #allocation3 [shape = 's32[1]{0}', space=sflag, size = 0x4, scoped, tag = 'scoped memory for tpu_custom_call.1']
    #allocation4 [shape = 's32[1]{0}', space=sflag, size = 0x4, scoped, tag = 'scoped memory for tpu_custom_call.1']
    #allocation5 [shape = 'u8[65536]{0}', space=vmem, size = 0x10000, scoped, tag = 'input window, operand 1, single buffered']
    #allocation6 [shape = 's32[1]{0}', space=sflag, size = 0x4, scoped, tag = 'scoped memory for tpu_custom_call.1']
    #allocation7 [shape = 'u8[4096]{0}', space=vmem, size = 0x1000, scoped, tag = 'output window, operand 0, single buffered']
    %8 = vsyncpa [#allocation3], 0
    %9 = vsyncpa [#allocation6], 0
    %10 = vsyncpa [#allocation4], 0
    // Predicated region
    $region2: #{tpu_custom_call.1} parent=1 // pred_check
      _
    $region3: #{tpu_custom_call.1} parent=1 // pred_check_branch
      %12 = sbr.rel (0) target = $region5
    $region4: #{tpu_custom_call.1} parent=1 // pred_region
      %14 = vsyncadd [#allocation3], 0
      %s16 = sshll.u32 %s0, 4
      %s17 = int_to_ptr.hbm [resolvable:$true] %s16
      %s18 = sshll.u32 [#allocation2], 4
      %s19 = int_to_ptr.vmem [resolvable:$true] %s18
      %21 = dma.hbm_to_vmem [thread:$0]  %s17, 128, %s19, [#allocation3]
    $region5: #{tpu_custom_call.1} parent=1 // pred_fallthru
      _
    // Predicated region
    $region6: #{tpu_custom_call.1} parent=1 // pred_check
      _
    $region7: #{tpu_custom_call.1} parent=1 // pred_check_branch
      %23 = sbr.rel (0) target = $region9
    $region8: #{tpu_custom_call.1} parent=1 // pred_region
      %25 = vsyncadd [#allocation6], 0
      %s26 = sshll.u32 %s1, 4
      %s27 = int_to_ptr.hbm [resolvable:$true] %s26
      %s28 = sshll.u32 [#allocation5], 4
      %s29 = int_to_ptr.vmem [resolvable:$true] %s28
      %34 = dma.hbm_to_vmem [thread:$0]  %s27, 2048, %s29, [#allocation6], 128, 128, 8
    $region9: #{tpu_custom_call.1} parent=1 // pred_fallthru
      _
    // Predicated region
    $region10: #{tpu_custom_call.1} parent=1 // pred_check
      _
    $region11: #{tpu_custom_call.1} parent=1 // pred_check_branch
      %36 = sbr.rel (0) target = $region13
    $region12: #{tpu_custom_call.1} parent=1 // pred_region
      _
    $region13: #{tpu_custom_call.1} parent=1 // pred_fallthru
      _
    // Predicated region
    $region14: #{tpu_custom_call.1} parent=1 // pred_check
      _
    $region15: #{tpu_custom_call.1} parent=1 // pred_check_branch
      %38 = sbr.rel (0) target = $region17
    $region16: #{tpu_custom_call.1} parent=1 // pred_region
      %40 = dma.done [#allocation3], 128
    $region17: #{tpu_custom_call.1} parent=1 // pred_fallthru
      _
    // Predicated region
    $region18: #{tpu_custom_call.1} parent=1 // pred_check
      _
    $region19: #{tpu_custom_call.1} parent=1 // pred_check_branch
      %42 = sbr.rel (0) target = $region21
    $region20: #{tpu_custom_call.1} parent=1 // pred_region
      %44 = dma.done [#allocation6], 2048
    $region21: #{tpu_custom_call.1} parent=1 // pred_fallthru
      _
    %v45 = vld [vmem:[#allocation2] sm:$0xff]
    %v46 = vld [vmem:[#allocation5] sm:$0xff]
    %v47 = vld [vmem:[#allocation5 + $0x8] sm:$0xff]
    %v48 = vld [vmem:[#allocation5 + $0x10] sm:$0xff]
    %v49 = vld [vmem:[#allocation5 + $0x18] sm:$0xff]
    %v50 = vld [vmem:[#allocation5 + $0x20] sm:$0xff]
    %v51 = vld [vmem:[#allocation5 + $0x28] sm:$0xff]
    %v52 = vld [vmem:[#allocation5 + $0x30] sm:$0xff]
    %v53 = vld [vmem:[#allocation5 + $0x38] sm:$0xff]
    %v54 = vld [vmem:[#allocation5 + $0x40] sm:$0xff]
    %v55 = vld [vmem:[#allocation5 + $0x48] sm:$0xff]
    %v56 = vld [vmem:[#allocation5 + $0x50] sm:$0xff]
    %v57 = vld [vmem:[#allocation5 + $0x58] sm:$0xff]
    %v58 = vld [vmem:[#allocation5 + $0x60] sm:$0xff]
    %v59 = vld [vmem:[#allocation5 + $0x68] sm:$0xff]
    %v60 = vld [vmem:[#allocation5 + $0x70] sm:$0xff]
    %v61 = vld [vmem:[#allocation5 + $0x78] sm:$0xff]
    %v62 = vld [vmem:[%s2] sm:$0x1]
    %v64 = vperm.slane %v62, 0
    %66 = vmatpush.xpose.msra.mxu0 %v61
    %67 = vmatpush.xpose.msra.mxu0 %v60
    %68 = vmatpush.xpose.msra.mxu0 %v59
    %69 = vmatpush.xpose.msra.mxu0 %v58
    %70 = vmatpush.xpose.msra.mxu0 %v57
    %71 = vmatpush.xpose.msra.mxu0 %v56
    %72 = vmatpush.xpose.msra.mxu0 %v55
    %73 = vmatpush.xpose.msra.mxu0 %v54
    %74 = vmatpush.xpose.msra.mxu0 %v53
    %75 = vmatpush.xpose.msra.mxu0 %v52
    %76 = vmatpush.xpose.msra.mxu0 %v51
    %77 = vmatpush.xpose.msra.mxu0 %v50
    %78 = vmatpush.xpose.msra.mxu0 %v49
    %79 = vmatpush.xpose.msra.mxu0 %v48
    %80 = vmatpush.xpose.msra.mxu0 %v47
    %81 = vmatpush.xpose.msra.mxu0 %v46
    %82 = vmatmul.f32.gmra.mxu0 %v45
    %v83 = vpop.f32.mrf.mxu0
    %v84 = vadd.f32 %v64, %v83
    %85 = vdwg.mxu0
    %v86 = vmul.f32 %v84, %v84
    %87 = vadd.xlane.f32.xlu0 %v86
    %v88 = vpop.xlane.xlu0 %87
    %v89 = vrsqrt.pop %v88
    %v90 = vmul.f32 %v89, %v88
    %v91 = vmul.f32 %v90, %v89
    %v92 = vmul.f32 0.5, %v91
    %v93 = vsub.f32 1.5, %v92
    %v94 = vmul.f32 %v89, %v93
    %v95 = vmul.f32 %v88, %v94
    %vm96 = vcmp.eq.f32.partialorder %v88, inf
    %v97 = vsel %vm96, %v88, %v95
    %vm98 = vcmp.eq.f32.partialorder %v88, 0.0
    %v99 = vand.u32 %v88, 2147483648
    %v100 = vsel %vm98, %v99, %v97
    %v101 = vmax.f32 %v100, 1e-12
    %v102 = vrcp.pop %v101
    %v103 = vmul.f32 %v101, %v102
    %v104 = vsub.f32 1.0, %v103
    %v105 = vmul.f32 %v102, %v104
    %v106 = vadd.f32 %v102, %v105
    %vm107 = vweird.f32 %v101
    %vm108 = vweird.f32 %v102
    %vm109 = vmor %vm107, %vm108
    %v110 = vsel %vm109, %v102, %v106
    %v111 = vand.u32 2147483647, %v101
    %vm112 = vcmp.eq.f32.partialorder %v111, 8.507059e+37
    %v113 = vand.u32 %v101, 2147483648
    %v114 = vor.u32 1.1754944e-38, %v113
    %v115 = vsel %vm112, %v114, %v110
    %v116 = vmul.f32 16.0, %v115
    %v117 = vmul.f32 %v84, %v116
    %118 = vst [vmem:[#allocation7] sm:$0xff] %v117
    // Predicated region
    $region22: #{tpu_custom_call.1} parent=1 // pred_check
      _
    $region23: #{tpu_custom_call.1} parent=1 // pred_check_branch
      %120 = sbr.rel (0) target = $region25
    $region24: #{tpu_custom_call.1} parent=1 // pred_region
      %122 = vsyncadd [#allocation4], 0
      %s124 = sshll.u32 [#allocation7], 4
      %s125 = int_to_ptr.vmem [resolvable:$true] %s124
      %s126 = sshll.u32 %s3, 4
      %s127 = int_to_ptr.hbm [resolvable:$true] %s126
      %129 = dma.vmem_to_hbm [thread:$0]  %s125, 128, %s127, [#allocation4]
    $region25: #{tpu_custom_call.1} parent=1 // pred_fallthru
      _
    // Predicated region
    $region26: #{tpu_custom_call.1} parent=1 // pred_check
      _
    $region27: #{tpu_custom_call.1} parent=1 // pred_check_branch
      %131 = sbr.rel (0) target = $region29
    $region28: #{tpu_custom_call.1} parent=1 // pred_region
      %133 = dma.done [#allocation4], 128
    $region29: #{tpu_custom_call.1} parent=1 // pred_fallthru
      _
    %134 = vsyncpa [#allocation3], 1
    %135 = vsyncpa [#allocation6], 1
    %136 = vsyncpa [#allocation4], 1

</llo_original>
